<compile_context>
chip_gen: v7x
topology: tpu7x:2x2x1
jax: 0.10.0
libtpu: 0.0.40
codegen_flags: <defaults>
</compile_context>

<pallas_src>
import jax
import jax.numpy as jnp
from jax.experimental import pallas as pl
from jax.experimental.pallas import tpu as pltpu


def _round_up(x, m):
    return (x + m - 1) // m * m


def classifier_forward(concat_z, params, *, tile_n=512, compute_dtype=jnp.float32):
    """Full classifier forward in a single (two-phase) Pallas kernel.

    concat_z: (N, view_num*latent_dim) float32
    returns: (label_pre (N,) int32, prob (N, classes) float32)
    """
    N, d_in = concat_z.shape
    d_hid = params["w1"].shape[1]
    classes = params["w2"].shape[1]

    DH = _round_up(d_hid, 128)     # lane-dense hidden width
    CP = _round_up(classes, 128)   # lane-dense class width
    VP = max(DH, CP)               # width of the packed per-feature-vector slab

    TILE_N = min(int(tile_n), _round_up(N, 8))
    N_pad = _round_up(N, TILE_N)
    n_tiles = N_pad // TILE_N

    f32 = jnp.float32
    NEG = f32(-1e30)               # finite "-inf" for padded class logits
    inv_n = 1.0 / float(N)
    eps = 1e-5

    # ---------------- parameter / input prep (lane-dense padding) ----------------
    w1 = jnp.zeros((d_in, DH), f32).at[:, :d_hid].set(params["w1"].astype(f32))
    w2 = jnp.zeros((DH, CP), f32).at[:d_hid, :classes].set(params["w2"].astype(f32))

    # pack b1 / gamma / beta / b2 into one small slab -> a single DMA'd input
    vecs = jnp.zeros((4, VP), f32)
    vecs = vecs.at[0, :d_hid].set(params["b1"].reshape(-1).astype(f32))
    vecs = vecs.at[1, :d_hid].set(params["gamma"].reshape(-1).astype(f32))
    vecs = vecs.at[2, :d_hid].set(params["beta"].reshape(-1).astype(f32))
    b2_row = jnp.full((CP,), NEG, f32).at[:classes].set(params["b2"].reshape(-1).astype(f32))
    vecs = vecs.at[3, :CP].set(b2_row)

    x = jnp.zeros((N_pad, d_in), f32).at[:N, :].set(concat_z.astype(f32))

    # Optional bf16 MXU path (v6e/v7x): halves HBM bytes for x; BN/softmax stay f32.
    x = x.astype(compute_dtype)
    w1 = w1.astype(compute_dtype)
    w2 = w2.astype(compute_dtype)

    # ------------------------------- kernel --------------------------------------
    def kernel(x_ref, w1_ref, vec_ref, w2_ref, prob_ref, label_ref, sum_s, ssq_s):
        phase = pl.program_id(0)   # 0 = accumulate batch stats, 1 = normalize+classify
        tile = pl.program_id(1)

        b1 = vec_ref[0:1, :DH]
        gamma = vec_ref[1:2, :DH]
        beta = vec_ref[2:3, :DH]
        b2 = vec_ref[3:4, :CP]

        def hidden():
            # Linear-1 on the MXU, f32 accumulate. (b1 kept for fidelity even though
            # training-mode BN cancels it.)
            return jnp.dot(x_ref[...], w1_ref[...],
                           preferred_element_type=jnp.float32) + b1

        @pl.when(phase == 0)
        def _accumulate():
            @pl.when(tile == 0)
            def _init():
                sum_s[...] = jnp.zeros_like(sum_s)
                ssq_s[...] = jnp.zeros_like(ssq_s)

            h = hidden()
            # Valid-row mask as a (1, TILE_N) row so the per-feature column sums
            # ride the otherwise-idle MXU instead of cross-sublane XLU reductions.
            rows = tile * TILE_N + jax.lax.broadcasted_iota(jnp.int32, (1, TILE_N), 1)
            mrow = (rows < N).astype(jnp.float32)
            sum_s[...] += jnp.dot(mrow, h, preferred_element_type=jnp.float32)
            ssq_s[...] += jnp.dot(mrow, h * h, preferred_element_type=jnp.float32)

        @pl.when(phase == 1)
        def _classify():
            h = hidden()

            # BatchNorm1d, training-mode: global batch mean / biased variance.
            mean = sum_s[...] * inv_n
            var = jnp.maximum(ssq_s[...] * inv_n - mean * mean, 0.0)
            h = (h - mean) * jax.lax.rsqrt(var + eps) * gamma + beta

            # ReLU
            h = jnp.maximum(h, 0.0)

            # Linear-2 (padded w2 rows/cols are zero; padded b2 lanes are -1e30).
            logits = jnp.dot(h.astype(compute_dtype), w2_ref[...],
                             preferred_element_type=jnp.float32) + b2

            # Numerically stable softmax; reciprocal on the EUP.
            m = jnp.max(logits, axis=1, keepdims=True)
            e = jnp.exp(logits - m)
            s = jnp.sum(e, axis=1, keepdims=True)
            prob_ref[...] = e * pl.reciprocal(s, approx=True)

            # Fused argmax over the lane axis; ties break to the lowest index
            # (matches np.argmax). Padded lanes are -1e30 and can never win.
            ids = jax.lax.broadcasted_iota(jnp.int32, (TILE_N, CP), 1)
            label_ref[...] = jnp.min(jnp.where(logits == m, ids, CP),
                                     axis=1, keepdims=True).astype(jnp.int32)

    # Output index maps return block 0 during phase 0 (nothing is written then) and
    # block `i` during phase 1 -> no redundant/garbage HBM writebacks.
    prob_pad, label_pad = pl.pallas_call(
        kernel,
        out_shape=(jax.ShapeDtypeStruct((N_pad, CP), jnp.float32),
                   jax.ShapeDtypeStruct((N_pad, 1), jnp.int32)),
        grid=(2, n_tiles),
        in_specs=[
            pl.BlockSpec((TILE_N, d_in), lambda p, i: (i, 0)),   # x: batch-tiled
            pl.BlockSpec((d_in, DH), lambda p, i: (0, 0)),       # w1: resident
            pl.BlockSpec((4, VP), lambda p, i: (0, 0)),          # packed b1/gamma/beta/b2
            pl.BlockSpec((DH, CP), lambda p, i: (0, 0)),         # w2: resident
        ],
        out_specs=(
            pl.BlockSpec((TILE_N, CP), lambda p, i: (i * p, 0)),
            pl.BlockSpec((TILE_N, 1), lambda p, i: (i * p, 0)),
        ),
        scratch_shapes=[pltpu.VMEM((1, DH), jnp.float32),   # sum of h
                        pltpu.VMEM((1, DH), jnp.float32)],  # sum of h^2
        compiler_params=pltpu.CompilerParams(
            # Both axes must be sequential: phase ordering + shared BN-stat scratch.
            dimension_semantics=("arbitrary", "arbitrary")),
    )(x, w1, vecs, w2)

    return label_pad[:N, 0], prob_pad[:N, :classes]


def init_params(key, view_num, latent_dim, classes):
    """Deterministic parameter init mimicking the module's layer shapes."""
    d_in = int(view_num * latent_dim)
    d_hid = int(latent_dim / 2)
    k1, k2, k3, k4 = jax.random.split(key, 4)

    def uniform(k, shape, fan_in):
        bound = 1.0 / jnp.sqrt(fan_in)
        return jax.random.uniform(k, shape, jnp.float32, -bound, bound)

    return {
        "w1": uniform(k1, (d_in, d_hid), d_in),
        "b1": uniform(k2, (1, d_hid), d_in),
        "gamma": jnp.ones((1, d_hid), jnp.float32),   # BatchNorm1d weight init
        "beta": jnp.zeros((1, d_hid), jnp.float32),   # BatchNorm1d bias init
        "w2": uniform(k3, (d_hid, classes), d_hid),
        "b2": uniform(k4, (1, classes), d_hid),
    }


def _ref_forward(x, p):
    """Pure-JAX reference (training-mode BN, biased variance, eps=1e-5)."""
    h = x @ p["w1"] + p["b1"].reshape(1, -1)
    mu = jnp.mean(h, axis=0, keepdims=True)
    var = jnp.mean((h - mu) ** 2, axis=0, keepdims=True)
    h = (h - mu) * jax.lax.rsqrt(var + 1e-5)
    h = h * p["gamma"].reshape(1, -1) + p["beta"].reshape(1, -1)
    h = jnp.maximum(h, 0.0)
    logits = h @ p["w2"] + p["b2"].reshape(1, -1)
    prob = jax.nn.softmax(logits, axis=1)
    return jnp.argmax(prob, axis=1).astype(jnp.int32), prob


if __name__ == "__main__":
    # Small, forward-consistent shapes: structure = [view_num*latent_dim, latent_dim//2, classes]
    view_num, latent_dim, classes = 2, 32, 4
    N = 8

    key = jax.random.PRNGKey(0)
    k_params, k_x = jax.random.split(key)
    params = init_params(k_params, view_num, latent_dim, classes)

    concat_z = jax.random.normal(k_x, (N, view_num * latent_dim), jnp.float32)

    label_pre, prob = classifier_forward(concat_z, params)
    jax.block_until_ready((label_pre, prob))

    # Correctness checks against pure-JAX reference.
    ref_label, ref_prob = _ref_forward(concat_z, params)
    assert prob.shape == (N, classes)
    assert label_pre.shape == (N,)
    assert jnp.allclose(jnp.sum(prob, axis=1), 1.0, atol=2e-3)          # approx-reciprocal tol
    assert jnp.allclose(prob, ref_prob, atol=2e-3, rtol=2e-3)
    assert jnp.array_equal(label_pre, ref_label)

    print("KERNEL_OK")
</pallas_src>

<mosaic_0001>
module attributes {stable_mosaic.version = 11 : i64} {
  func.func @kernel(%arg0: i32, %arg1: i32, %arg2: memref<8x64xf32, #tpu.memory_space<vmem>>, %arg3: memref<64x128xf32, #tpu.memory_space<vmem>>, %arg4: memref<4x128xf32, #tpu.memory_space<vmem>>, %arg5: memref<128x128xf32, #tpu.memory_space<vmem>>, %arg6: memref<8x128xf32, #tpu.memory_space<vmem>>, %arg7: memref<8x1xi32, #tpu.memory_space<vmem>>, %arg8: memref<1x128xf32, #tpu.memory_space<vmem>>, %arg9: memref<1x128xf32, #tpu.memory_space<vmem>>) attributes {dimension_semantics = [#tpu.dimension_semantics<arbitrary>, #tpu.dimension_semantics<arbitrary>], iteration_bounds = array<i64: 2, 1>, scalar_prefetch = 0 : i64, scratch_operands = 2 : i64, tpu.core_type = #tpu.core_type<tc>, window_params = [{transform_indices = @transform_0, window_bounds = array<i64: 8, 64>}, {pipeline_mode = #tpu.pipeline_mode<synchronous>, transform_indices = @transform_1, window_bounds = array<i64: 64, 128>}, {pipeline_mode = #tpu.pipeline_mode<synchronous>, transform_indices = @transform_2, window_bounds = array<i64: 4, 128>}, {pipeline_mode = #tpu.pipeline_mode<synchronous>, transform_indices = @transform_3, window_bounds = array<i64: 128, 128>}, {transform_indices = @transform_4, window_bounds = array<i64: 8, 128>}, {transform_indices = @transform_5, window_bounds = array<i64: 8, 1>}]} {
    %c0 = arith.constant 0 : index
    %c0_0 = arith.constant 0 : index
    %0 = vector.load %arg4[%c0, %c0_0] : memref<4x128xf32, #tpu.memory_space<vmem>>, vector<1x128xf32>
    %c1 = arith.constant 1 : index
    %c0_1 = arith.constant 0 : index
    %1 = vector.load %arg4[%c1, %c0_1] : memref<4x128xf32, #tpu.memory_space<vmem>>, vector<1x128xf32>
    %c2 = arith.constant 2 : index
    %c0_2 = arith.constant 0 : index
    %2 = vector.load %arg4[%c2, %c0_2] : memref<4x128xf32, #tpu.memory_space<vmem>>, vector<1x128xf32>
    %c3 = arith.constant 3 : index
    %c0_3 = arith.constant 0 : index
    %3 = vector.load %arg4[%c3, %c0_3] : memref<4x128xf32, #tpu.memory_space<vmem>>, vector<1x128xf32>
    %c0_i32 = arith.constant 0 : i32
    %4 = arith.cmpi eq, %arg0, %c0_i32 : i32
    %5 = arith.extui %4 : i1 to i32
    %c0_i32_4 = arith.constant 0 : i32
    %6 = arith.cmpi ne, %5, %c0_i32_4 : i32
    scf.if %6 {
      %c0_i32_6 = arith.constant 0 : i32
      %10 = arith.cmpi eq, %arg1, %c0_i32_6 : i32
      %11 = arith.extui %10 : i1 to i32
      %c0_i32_7 = arith.constant 0 : i32
      %12 = arith.cmpi ne, %11, %c0_i32_7 : i32
      scf.if %12 {
        %cst_23 = arith.constant 0.000000e+00 : f32
        %35 = vector.broadcast %cst_23 : f32 to vector<1x128xf32>
        %c0_24 = arith.constant 0 : index
        %c0_25 = arith.constant 0 : index
        %36 = vector.load %arg8[%c0_24, %c0_25] : memref<1x128xf32, #tpu.memory_space<vmem>>, vector<1x128xf32>
        tpu.vector_store %arg8[%c0_24, %c0_25], %35 {strides = array<i32>} : memref<1x128xf32, #tpu.memory_space<vmem>>, vector<1x128xf32>,
        %cst_26 = arith.constant 0.000000e+00 : f32
        %37 = vector.broadcast %cst_26 : f32 to vector<1x128xf32>
        %c0_27 = arith.constant 0 : index
        %c0_28 = arith.constant 0 : index
        %38 = vector.load %arg9[%c0_27, %c0_28] : memref<1x128xf32, #tpu.memory_space<vmem>>, vector<1x128xf32>
        tpu.vector_store %arg9[%c0_27, %c0_28], %37 {strides = array<i32>} : memref<1x128xf32, #tpu.memory_space<vmem>>, vector<1x128xf32>,
      } else {
      }
      %c0_8 = arith.constant 0 : index
      %c0_9 = arith.constant 0 : index
      %13 = vector.load %arg2[%c0_8, %c0_9] : memref<8x64xf32, #tpu.memory_space<vmem>>, vector<8x64xf32>
      %c0_10 = arith.constant 0 : index
      %c0_11 = arith.constant 0 : index
      %14 = vector.load %arg3[%c0_10, %c0_11] : memref<64x128xf32, #tpu.memory_space<vmem>>, vector<64x128xf32>
      %cst = arith.constant dense<0.000000e+00> : vector<8x128xf32>
      %15 = tpu.matmul %13, %14, %cst {dimension_numbers = #tpu.dot_dimension_numbers<[1], [0], [0], [1], [0, 0, 1, 1], [], []>} : vector<8x64xf32>, vector<64x128xf32>, vector<8x128xf32> -> vector<8x128xf32>
      %16 = vector.broadcast %0 : vector<1x128xf32> to vector<8x128xf32>
      %17 = arith.addf %15, %16 : vector<8x128xf32>
      %c8_i32 = arith.constant 8 : i32
      %18 = arith.muli %arg1, %c8_i32 : i32
      %19 = tpu.iota {dimensions = array<i32: 1>} : vector<1x8xi32>
      %20 = vector.broadcast %18 : i32 to vector<1x8xi32>
      %21 = arith.addi %20, %19 : vector<1x8xi32>
      %c8_i32_12 = arith.constant 8 : i32
      %22 = vector.broadcast %c8_i32_12 : i32 to vector<1x8xi32>
      %23 = arith.cmpi slt, %21, %22 : vector<1x8xi32>
      %24 = arith.extui %23 : vector<1x8xi1> to vector<1x8xi32>
      %25 = arith.sitofp %24 : vector<1x8xi32> to vector<1x8xf32>
      %c0_13 = arith.constant 0 : index
      %c0_14 = arith.constant 0 : index
      %26 = vector.load %arg8[%c0_13, %c0_14] : memref<1x128xf32, #tpu.memory_space<vmem>>, vector<1x128xf32>
      %cst_15 = arith.constant dense<0.000000e+00> : vector<1x128xf32>
      %27 = tpu.matmul %25, %17, %cst_15 {dimension_numbers = #tpu.dot_dimension_numbers<[1], [0], [0], [1], [0, 0, 1, 1], [], []>} : vector<1x8xf32>, vector<8x128xf32>, vector<1x128xf32> -> vector<1x128xf32>
      %28 = arith.addf %26, %27 : vector<1x128xf32>
      %c0_16 = arith.constant 0 : index
      %c0_17 = arith.constant 0 : index
      %29 = vector.load %arg8[%c0_16, %c0_17] : memref<1x128xf32, #tpu.memory_space<vmem>>, vector<1x128xf32>
      tpu.vector_store %arg8[%c0_16, %c0_17], %28 {strides = array<i32>} : memref<1x128xf32, #tpu.memory_space<vmem>>, vector<1x128xf32>,
      %c0_18 = arith.constant 0 : index
      %c0_19 = arith.constant 0 : index
      %30 = vector.load %arg9[%c0_18, %c0_19] : memref<1x128xf32, #tpu.memory_space<vmem>>, vector<1x128xf32>
      %31 = arith.mulf %17, %17 : vector<8x128xf32>
      %cst_20 = arith.constant dense<0.000000e+00> : vector<1x128xf32>
      %32 = tpu.matmul %25, %31, %cst_20 {dimension_numbers = #tpu.dot_dimension_numbers<[1], [0], [0], [1], [0, 0, 1, 1], [], []>} : vector<1x8xf32>, vector<8x128xf32>, vector<1x128xf32> -> vector<1x128xf32>
      %33 = arith.addf %30, %32 : vector<1x128xf32>
      %c0_21 = arith.constant 0 : index
      %c0_22 = arith.constant 0 : index
      %34 = vector.load %arg9[%c0_21, %c0_22] : memref<1x128xf32, #tpu.memory_space<vmem>>, vector<1x128xf32>
      tpu.vector_store %arg9[%c0_21, %c0_22], %33 {strides = array<i32>} : memref<1x128xf32, #tpu.memory_space<vmem>>, vector<1x128xf32>,
    } else {
    }
    %c1_i32 = arith.constant 1 : i32
    %7 = arith.cmpi eq, %arg0, %c1_i32 : i32
    %8 = arith.extui %7 : i1 to i32
    %c0_i32_5 = arith.constant 0 : i32
    %9 = arith.cmpi ne, %8, %c0_i32_5 : i32
    scf.if %9 {
      %c0_6 = arith.constant 0 : index
      %c0_7 = arith.constant 0 : index
      %10 = vector.load %arg2[%c0_6, %c0_7] : memref<8x64xf32, #tpu.memory_space<vmem>>, vector<8x64xf32>
      %c0_8 = arith.constant 0 : index
      %c0_9 = arith.constant 0 : index
      %11 = vector.load %arg3[%c0_8, %c0_9] : memref<64x128xf32, #tpu.memory_space<vmem>>, vector<64x128xf32>
      %cst = arith.constant dense<0.000000e+00> : vector<8x128xf32>
      %12 = tpu.matmul %10, %11, %cst {dimension_numbers = #tpu.dot_dimension_numbers<[1], [0], [0], [1], [0, 0, 1, 1], [], []>} : vector<8x64xf32>, vector<64x128xf32>, vector<8x128xf32> -> vector<8x128xf32>
      %13 = vector.broadcast %0 : vector<1x128xf32> to vector<8x128xf32>
      %14 = arith.addf %12, %13 : vector<8x128xf32>
      %c0_10 = arith.constant 0 : index
      %c0_11 = arith.constant 0 : index
      %15 = vector.load %arg8[%c0_10, %c0_11] : memref<1x128xf32, #tpu.memory_space<vmem>>, vector<1x128xf32>
      %cst_12 = arith.constant 1.250000e-01 : f32
      %16 = vector.broadcast %cst_12 : f32 to vector<1x128xf32>
      %17 = arith.mulf %15, %16 : vector<1x128xf32>
      %c0_13 = arith.constant 0 : index
      %c0_14 = arith.constant 0 : index
      %18 = vector.load %arg9[%c0_13, %c0_14] : memref<1x128xf32, #tpu.memory_space<vmem>>, vector<1x128xf32>
      %cst_15 = arith.constant 1.250000e-01 : f32
      %19 = vector.broadcast %cst_15 : f32 to vector<1x128xf32>
      %20 = arith.mulf %18, %19 : vector<1x128xf32>
      %21 = arith.mulf %17, %17 : vector<1x128xf32>
      %22 = arith.subf %20, %21 : vector<1x128xf32>
      %cst_16 = arith.constant 0.000000e+00 : f32
      %23 = vector.broadcast %cst_16 : f32 to vector<1x128xf32>
      %24 = arith.maximumf %22, %23 : vector<1x128xf32>
      %25 = vector.broadcast %17 : vector<1x128xf32> to vector<8x128xf32>
      %26 = arith.subf %14, %25 : vector<8x128xf32>
      %cst_17 = arith.constant 9.99999974E-6 : f32
      %27 = vector.broadcast %cst_17 : f32 to vector<1x128xf32>
      %28 = arith.addf %24, %27 : vector<1x128xf32>
      %29 = math.rsqrt %28 : vector<1x128xf32>
      %30 = vector.broadcast %29 : vector<1x128xf32> to vector<8x128xf32>
      %31 = arith.mulf %26, %30 : vector<8x128xf32>
      %32 = vector.broadcast %1 : vector<1x128xf32> to vector<8x128xf32>
      %33 = arith.mulf %31, %32 : vector<8x128xf32>
      %34 = vector.broadcast %2 : vector<1x128xf32> to vector<8x128xf32>
      %35 = arith.addf %33, %34 : vector<8x128xf32>
      %cst_18 = arith.constant 0.000000e+00 : f32
      %36 = vector.broadcast %cst_18 : f32 to vector<8x128xf32>
      %37 = arith.maximumf %35, %36 : vector<8x128xf32>
      %c0_19 = arith.constant 0 : index
      %c0_20 = arith.constant 0 : index
      %38 = vector.load %arg5[%c0_19, %c0_20] : memref<128x128xf32, #tpu.memory_space<vmem>>, vector<128x128xf32>
      %cst_21 = arith.constant dense<0.000000e+00> : vector<8x128xf32>
      %39 = tpu.matmul %37, %38, %cst_21 {dimension_numbers = #tpu.dot_dimension_numbers<[1], [0], [0], [1], [0, 0, 1, 1], [], []>} : vector<8x128xf32>, vector<128x128xf32>, vector<8x128xf32> -> vector<8x128xf32>
      %40 = vector.broadcast %3 : vector<1x128xf32> to vector<8x128xf32>
      %41 = arith.addf %39, %40 : vector<8x128xf32>
      %cst_22 = arith.constant dense<0xFF800000> : vector<8xf32>
      %42 = vector.multi_reduction <maximumf>, %41, %cst_22 [1] : vector<8x128xf32> to vector<8xf32>
      %43 = vector.shape_cast %42 : vector<8xf32> to vector<8x1xf32>
      %44 = vector.broadcast %43 : vector<8x1xf32> to vector<8x128xf32>
      %45 = arith.subf %41, %44 : vector<8x128xf32>
      %46 = math.exp %45 : vector<8x128xf32>
      %cst_23 = arith.constant dense<0.000000e+00> : vector<8xf32>
      %47 = vector.multi_reduction <add>, %46, %cst_23 [1] : vector<8x128xf32> to vector<8xf32>
      %48 = vector.shape_cast %47 : vector<8xf32> to vector<8x1xf32>
      %49 = tpu.reciprocal %48 {approx = true} : vector<8x1xf32> -> vector<8x1xf32>
      %50 = vector.broadcast %49 : vector<8x1xf32> to vector<8x128xf32>
      %51 = arith.mulf %46, %50 : vector<8x128xf32>
      %c0_24 = arith.constant 0 : index
      %c0_25 = arith.constant 0 : index
      %52 = vector.load %arg6[%c0_24, %c0_25] : memref<8x128xf32, #tpu.memory_space<vmem>>, vector<8x128xf32>
      tpu.vector_store %arg6[%c0_24, %c0_25], %51 {strides = array<i32>} : memref<8x128xf32, #tpu.memory_space<vmem>>, vector<8x128xf32>,
      %53 = tpu.iota {dimensions = array<i32: 1>} : vector<8x128xi32>
      %54 = vector.broadcast %43 : vector<8x1xf32> to vector<8x128xf32>
      %55 = arith.cmpf oeq, %41, %54 : vector<8x128xf32>
      %c128_i32 = arith.constant 128 : i32
      %56 = vector.broadcast %c128_i32 : i32 to vector<8x128xi32>
      %57 = arith.select %55, %53, %56 : vector<8x128xi1>, vector<8x128xi32>
      %cst_26 = arith.constant dense<2147483647> : vector<8xi32>
      %58 = vector.multi_reduction <minsi>, %57, %cst_26 [1] : vector<8x128xi32> to vector<8xi32>
      %59 = vector.shape_cast %58 : vector<8xi32> to vector<8x1xi32>
      %c0_27 = arith.constant 0 : index
      %c0_28 = arith.constant 0 : index
      %60 = vector.load %arg7[%c0_27, %c0_28] : memref<8x1xi32, #tpu.memory_space<vmem>>, vector<8x1xi32>
      tpu.vector_store %arg7[%c0_27, %c0_28], %59 {strides = array<i32>} : memref<8x1xi32, #tpu.memory_space<vmem>>, vector<8x1xi32>,
    } else {
    }
    return
  }
  func.func @transform_0(%arg0: i32, %arg1: i32) -> (i32, i32) {
    %c0_i32 = arith.constant 0 : i32
    %c0_i32_0 = arith.constant 0 : i32
    return %arg1, %c0_i32 : i32, i32
  }
  func.func @transform_1(%arg0: i32, %arg1: i32) -> (i32, i32) {
    %c0_i32 = arith.constant 0 : i32
    %c0_i32_0 = arith.constant 0 : i32
    %c0_i32_1 = arith.constant 0 : i32
    return %c0_i32, %c0_i32_0 : i32, i32
  }
  func.func @transform_2(%arg0: i32, %arg1: i32) -> (i32, i32) {
    %c0_i32 = arith.constant 0 : i32
    %c0_i32_0 = arith.constant 0 : i32
    %c0_i32_1 = arith.constant 0 : i32
    return %c0_i32, %c0_i32_0 : i32, i32
  }
  func.func @transform_3(%arg0: i32, %arg1: i32) -> (i32, i32) {
    %c0_i32 = arith.constant 0 : i32
    %c0_i32_0 = arith.constant 0 : i32
    %c0_i32_1 = arith.constant 0 : i32
    return %c0_i32, %c0_i32_0 : i32, i32
  }
  func.func @transform_4(%arg0: i32, %arg1: i32) -> (i32, i32) {
    %0 = arith.muli %arg1, %arg0 : i32
    %c0_i32 = arith.constant 0 : i32
    %c0_i32_0 = arith.constant 0 : i32
    return %0, %c0_i32 : i32, i32
  }
  func.func @transform_5(%arg0: i32, %arg1: i32) -> (i32, i32) {
    %0 = arith.muli %arg1, %arg0 : i32
    %c0_i32 = arith.constant 0 : i32
    %c0_i32_0 = arith.constant 0 : i32
    return %0, %c0_i32 : i32, i32
  }
}

</mosaic_0001>

<llo_original>
// kernel: tpu_custom_call.1
$region0: #{tpu_custom_call.1}
  #allocation0 [shape = 'u32[]', space=smem, size = 0x4, offset = 0x4, fixed_abs, tag = 'smem constant byte address 0x4 - core index']
  #allocation1 [shape = 'u32[144,128]{1,0:T(1,128)}', space=vmem, size = 0x12000, scoped, tag = 'internal scratch']
  #allocation2 [shape = 'f32[1,128]{1,0:T(1,128)}', space=vmem, size = 0x200, scoped, tag = 'scratch operand']
  #allocation3 [shape = 'f32[1,128]{1,0:T(1,128)}', space=vmem, size = 0x200, scoped, tag = 'scratch operand']
  %s0 = inlined_call_operand.hbm [shape: f32[8,64], index: 0, kind: input, shape index: {}]
  %s1 = inlined_call_operand.hbm [shape: f32[64,128], index: 1, kind: input, shape index: {}]
  %s2 = inlined_call_operand.vmem [shape: f32[4,128], index: 2, kind: input, shape index: {}]
  %s3 = inlined_call_operand.hbm [shape: f32[128,128], index: 3, kind: input, shape index: {}]
  %s4 = inlined_call_operand.hbm [shape: f32[8,128], index: 4, kind: output, shape index: {0}]
  %s5 = inlined_call_operand.vmem [shape: s32[8,1], index: 5, kind: output, shape index: {1}]
  %6 = xla_tuple %s4, %s5
  %s7 = sld [smem:[#allocation0]]
  $region81: #{tpu_custom_call.1} parent=0
    _
  %s9 = ssub.s32 1, %s7
  %s10 = scalar_select 0, %s9, %s7
  $region1: #{tpu_custom_call.1} parent=0
    #allocation4 [shape = 'u8[4096]{0}', space=vmem, size = 0x1000, scoped, tag = 'input window, operand 0, single buffered']
    #allocation5 [shape = 's32[2]{0}', space=sflag, size = 0x8, scoped, tag = 'scoped memory for tpu_custom_call.1']
    #allocation6 [shape = 's32[2]{0}', space=sflag, size = 0x8, scoped, tag = 'scoped memory for tpu_custom_call.1']
    #allocation7 [shape = 'u8[32768]{0}', space=vmem, size = 0x8000, scoped, tag = 'input window, operand 1, single buffered']
    #allocation8 [shape = 's32[1]{0}', space=sflag, size = 0x4, scoped, tag = 'scoped memory for tpu_custom_call.1']
    #allocation9 [shape = 'u8[65536]{0}', space=vmem, size = 0x10000, scoped, tag = 'input window, operand 3, single buffered']
    #allocation10 [shape = 'u8[8192]{0}', space=vmem, size = 0x2000, scoped, tag = 'output window, operand 0']
    %11 = vsyncpa [#allocation5], 0
    %12 = vsyncpa [#allocation8], 0
    %13 = vsyncpa [#allocation6], 0
    %s14 = scalar_lea.sflag [#allocation6], 1
    %15 = vsyncpa %s14, 0
    loop: start=0, step=1, limit=4
    $region2: #{tpu_custom_call.1} parent=1 // loop_pre_header
      _
    $region3: #{tpu_custom_call.1} parent=1 // loop_header
      %s17 = sphi 0, %s21
      %p18 = scmp.ge.s32.totalorder %s17, 4
      %s24 = sphi 0, %s36
      %s25 = sphi 0, %s32
      %s26 = sphi 0, %s24
      %s27 = sphi 0, %s25
      %s28 = sphi 0, %s26
      %s29 = sphi 0, %s27
      %s39 = sphi 0, %s41
      %s42 = sphi 0, %s39
      %s43 = sphi 0, %s42
      %s59 = sphi 0, %s43
      %s63 = sphi 0, %s63
      %s65 = sphi 0, %s63
      %s66 = sphi 0, %s65
      %s80 = sphi 0, %s66
      %s84 = sphi 0, %s84
      %s86 = sphi 0, %s84
      %s87 = sphi 0, %s86
      %s101 = sphi 0, %s87
      %s105 = sphi 0, %s105
      %s107 = sphi 0, %s105
      %s108 = sphi 0, %s107
      %s122 = sphi 0, %s108
      %s130 = sphi 0, %s132
      %s133 = sphi 0, %s130
      %s134 = sphi 0, %s133
      %s150 = sphi 0, %s134
      %s158 = sphi 0, %s160
      %s161 = sphi 0, %s158
      %s162 = sphi 0, %s161
      %s178 = sphi 0, %s162
    $region4: #{tpu_custom_call.1} parent=1 // loop_header_branch
      %20 = sbr.rel (%p18) target = $region8
    $region5: #{tpu_custom_call.1} parent=1 // loop_body
      %s22 = ssub.s32 %s17, 1
      %s23 = ssub.s32 %s17, 2
      %s30 = sadd.s32 1, %s25
      %p31 = scmp.ge.s32.totalorder %s30, 1
      %s32 = scalar_select %p31, 0, %s30
      %s33 = sadd.s32 1, %s24
      %s34 = scalar_select %p31, %s33, %s24
      %p35 = scmp.ge.s32.totalorder %s34, 2
      %s36 = scalar_select %p35, 0, %s34
      %s37 = ssub.s32 %s25, %s32
      %p38 = scmp.eq.s32.totalorder %s37, 0
      %s40 = sadd.s32 %s39, 1
      %s41 = scalar_select %p38, %s39, %s40
      %p44 = pneg %p38
      %p45 = scmp.eq.s32.totalorder %s17, 1
      %p46 = por %p44, %p45
      %p47 = scmp.ne.s32.totalorder %s39, %s42
      %p48 = scmp.eq.s32.totalorder %s17, 0
      %p49 = por %p47, %p48
      %p50 = scmp.ne.s32.totalorder %s39, %s42
      %p51 = scmp.eq.s32.totalorder %s22, 1
      %p52 = por %p50, %p51
      %p53 = scmp.ne.s32.totalorder %s42, %s43
      %p54 = scmp.eq.s32.totalorder %s22, 0
      %p55 = por %p53, %p54
      %p56 = scmp.ne.s32.totalorder %s42, %s43
      %p57 = scmp.eq.s32.totalorder %s23, 1
      %p58 = por %p56, %p57
      %p60 = scmp.ne.s32.totalorder %s43, %s59
      %p61 = scmp.eq.s32.totalorder %s23, 0
      %p62 = por %p60, %p61
      %s64 = sadd.s32 %s63, 1
      %p67 = scmp.eq.s32.totalorder %s17, 1
      %p68 = scmp.ne.s32.totalorder %s63, %s65
      %p69 = scmp.eq.s32.totalorder %s17, 0
      %p70 = por %p68, %p69
      %p71 = scmp.ne.s32.totalorder %s63, %s65
      %p72 = scmp.eq.s32.totalorder %s22, 1
      %p73 = por %p71, %p72
      %p74 = scmp.ne.s32.totalorder %s65, %s66
      %p75 = scmp.eq.s32.totalorder %s22, 0
      %p76 = por %p74, %p75
      %p77 = scmp.ne.s32.totalorder %s65, %s66
      %p78 = scmp.eq.s32.totalorder %s23, 1
      %p79 = por %p77, %p78
      %p81 = scmp.ne.s32.totalorder %s66, %s80
      %p82 = scmp.eq.s32.totalorder %s23, 0
      %p83 = por %p81, %p82
      %s85 = sadd.s32 %s84, 1
      %p88 = scmp.eq.s32.totalorder %s17, 1
      %p89 = scmp.ne.s32.totalorder %s84, %s86
      %p90 = scmp.eq.s32.totalorder %s17, 0
      %p91 = por %p89, %p90
      %p92 = scmp.ne.s32.totalorder %s84, %s86
      %p93 = scmp.eq.s32.totalorder %s22, 1
      %p94 = por %p92, %p93
      %p95 = scmp.ne.s32.totalorder %s86, %s87
      %p96 = scmp.eq.s32.totalorder %s22, 0
      %p97 = por %p95, %p96
      %p98 = scmp.ne.s32.totalorder %s86, %s87
      %p99 = scmp.eq.s32.totalorder %s23, 1
      %p100 = por %p98, %p99
      %p102 = scmp.ne.s32.totalorder %s87, %s101
      %p103 = scmp.eq.s32.totalorder %s23, 0
      %p104 = por %p102, %p103
      %s106 = sadd.s32 %s105, 1
      %p109 = scmp.eq.s32.totalorder %s17, 1
      %p110 = scmp.ne.s32.totalorder %s105, %s107
      %p111 = scmp.eq.s32.totalorder %s17, 0
      %p112 = por %p110, %p111
      %p113 = scmp.ne.s32.totalorder %s105, %s107
      %p114 = scmp.eq.s32.totalorder %s22, 1
      %p115 = por %p113, %p114
      %p116 = scmp.ne.s32.totalorder %s107, %s108
      %p117 = scmp.eq.s32.totalorder %s22, 0
      %p118 = por %p116, %p117
      %p119 = scmp.ne.s32.totalorder %s107, %s108
      %p120 = scmp.eq.s32.totalorder %s23, 1
      %p121 = por %p119, %p120
      %p123 = scmp.ne.s32.totalorder %s108, %s122
      %p124 = scmp.eq.s32.totalorder %s23, 0
      %p125 = por %p123, %p124
      %s126 = smul.u32 %s25, %s24
      %s127 = smul.u32 %s32, %s36
      %s128 = ssub.s32 %s126, %s127
      %p129 = scmp.eq.s32.totalorder %s128, 0
      %s131 = sadd.s32 %s130, 1
      %s132 = scalar_select %p129, %s130, %s131
      %p135 = pneg %p129
      %p136 = scmp.eq.s32.totalorder %s17, 1
      %p137 = por %p135, %p136
      %p138 = scmp.ne.s32.totalorder %s130, %s133
      %p139 = scmp.eq.s32.totalorder %s17, 0
      %p140 = por %p138, %p139
      %p141 = scmp.ne.s32.totalorder %s130, %s133
      %p142 = scmp.eq.s32.totalorder %s22, 1
      %p143 = por %p141, %p142
      %p144 = scmp.ne.s32.totalorder %s133, %s134
      %p145 = scmp.eq.s32.totalorder %s22, 0
      %p146 = por %p144, %p145
      %p147 = scmp.ne.s32.totalorder %s133, %s134
      %p148 = scmp.eq.s32.totalorder %s23, 1
      %p149 = por %p147, %p148
      %p151 = scmp.ne.s32.totalorder %s134, %s150
      %p152 = scmp.eq.s32.totalorder %s23, 0
      %p153 = por %p151, %p152
      %s154 = smul.u32 %s25, %s24
      %s155 = smul.u32 %s32, %s36
      %s156 = ssub.s32 %s154, %s155
      %p157 = scmp.eq.s32.totalorder %s156, 0
      %s159 = sadd.s32 %s158, 1
      %s160 = scalar_select %p157, %s158, %s159
      %p163 = pneg %p157
      %p164 = scmp.eq.s32.totalorder %s17, 1
      %p165 = por %p163, %p164
      %p166 = scmp.ne.s32.totalorder %s158, %s161
      %p167 = scmp.eq.s32.totalorder %s17, 0
      %p168 = por %p166, %p167
      %p169 = scmp.ne.s32.totalorder %s158, %s161
      %p170 = scmp.eq.s32.totalorder %s22, 1
      %p171 = por %p169, %p170
      %p172 = scmp.ne.s32.totalorder %s161, %s162
      %p173 = scmp.eq.s32.totalorder %s22, 0
      %p174 = por %p172, %p173
      %p175 = scmp.ne.s32.totalorder %s161, %s162
      %p176 = scmp.eq.s32.totalorder %s23, 1
      %p177 = por %p175, %p176
      %p179 = scmp.ne.s32.totalorder %s162, %s178
      %p180 = scmp.eq.s32.totalorder %s23, 0
      %p181 = por %p179, %p180
      %p182 = scmp.le.s32.totalorder 1, %s17
      %p183 = scmp.lt.s32.totalorder %s17, 3
      %p184 = pnand %p182, %p183
      %p185 = pneg %p184
      // Predicated region
      $region9: #{tpu_custom_call.1} parent=5 // pred_check
        _
      $region10: #{tpu_custom_call.1} parent=5 // pred_check_branch
        %187 = sbr.rel (%p184) target = $region12
      $region11: #{tpu_custom_call.1} parent=5 // pred_region
        %s188 = ssub.s32 %s17, 1
        // Predicated region
        $region13: #{tpu_custom_call.1} parent=11 // pred_check
          %p189 = pneg %p55
        $region14: #{tpu_custom_call.1} parent=11 // pred_check_branch
          %191 = sbr.rel (%p189) target = $region16
        $region15: #{tpu_custom_call.1} parent=11 // pred_region
          %s193 = ssub.s32 128, 128
          %194 = vsyncadd [#allocation5], %s193
          %s195 = smul.addr %s27, 128
          %s196 = scalar_lea.hbm %s0, %s195
          %s198 = sshll.u32 [#allocation4], 4
          %s199 = int_to_ptr.vmem [resolvable:$true] %s198
          %201 = dma.hbm_to_vmem [thread:$0]  %s196, 128, %s199, [#allocation5]
        $region16: #{tpu_custom_call.1} parent=11 // pred_fallthru
          _
        // Predicated region
        $region17: #{tpu_custom_call.1} parent=11 // pred_check
          %p202 = pneg %p76
        $region18: #{tpu_custom_call.1} parent=11 // pred_check_branch
          %204 = sbr.rel (%p202) target = $region20
        $region19: #{tpu_custom_call.1} parent=11 // pred_region
          %s206 = ssub.s32 1024, 1024
          %207 = vsyncadd [#allocation8], %s206
          %s208 = sshll.u32 [#allocation7], 4
          %s209 = int_to_ptr.vmem [resolvable:$true] %s208
          %214 = dma.hbm_to_vmem [thread:$0]  %s1, 1024, %s209, [#allocation8], 128, 128, 8
        $region20: #{tpu_custom_call.1} parent=11 // pred_fallthru
          _
        // Predicated region
        $region21: #{tpu_custom_call.1} parent=11 // pred_check
          %p215 = pneg %p97
        $region22: #{tpu_custom_call.1} parent=11 // pred_check_branch
          %217 = sbr.rel (%p215) target = $region24
        $region23: #{tpu_custom_call.1} parent=11 // pred_region
          _
        $region24: #{tpu_custom_call.1} parent=11 // pred_fallthru
          _
        // Predicated region
        $region25: #{tpu_custom_call.1} parent=11 // pred_check
          %p218 = pneg %p118
        $region26: #{tpu_custom_call.1} parent=11 // pred_check_branch
          %220 = sbr.rel (%p218) target = $region28
        $region27: #{tpu_custom_call.1} parent=11 // pred_region
          %s222 = ssub.s32 2048, 2048
          %223 = vsyncadd [#allocation8], %s222
          %s224 = sshll.u32 [#allocation9], 4
          %s225 = int_to_ptr.vmem [resolvable:$true] %s224
          %230 = dma.hbm_to_vmem [thread:$0]  %s3, 2048, %s225, [#allocation8], 128, 128, 8
        $region28: #{tpu_custom_call.1} parent=11 // pred_fallthru
          _
      $region12: #{tpu_custom_call.1} parent=5 // pred_fallthru
        _
      %p231 = scmp.lt.s32.totalorder %s17, 2
      // Predicated region
      $region29: #{tpu_custom_call.1} parent=5 // pred_check
        %p232 = pneg %p231
      $region30: #{tpu_custom_call.1} parent=5 // pred_check_branch
        %234 = sbr.rel (%p232) target = $region32
      $region31: #{tpu_custom_call.1} parent=5 // pred_region
        _
      $region32: #{tpu_custom_call.1} parent=5 // pred_fallthru
        _
      %p235 = scmp.le.s32.totalorder 1, %s17
      %p236 = scmp.lt.s32.totalorder %s17, 3
      %p237 = pnand %p235, %p236
      %p238 = pneg %p237
      // Predicated region
      $region33: #{tpu_custom_call.1} parent=5 // pred_check
        _
      $region34: #{tpu_custom_call.1} parent=5 // pred_check_branch
        %240 = sbr.rel (%p237) target = $region36
      $region35: #{tpu_custom_call.1} parent=5 // pred_region
        %s241 = ssub.s32 %s17, 1
        // Predicated region
        $region37: #{tpu_custom_call.1} parent=35 // pred_check
          %p242 = pneg %p55
        $region38: #{tpu_custom_call.1} parent=35 // pred_check_branch
          %244 = sbr.rel (%p242) target = $region40
        $region39: #{tpu_custom_call.1} parent=35 // pred_region
          %245 = dma.done [#allocation5], 128
        $region40: #{tpu_custom_call.1} parent=35 // pred_fallthru
          _
        // Predicated region
        $region41: #{tpu_custom_call.1} parent=35 // pred_check
          %p246 = pneg %p76
        $region42: #{tpu_custom_call.1} parent=35 // pred_check_branch
          %248 = sbr.rel (%p246) target = $region44
        $region43: #{tpu_custom_call.1} parent=35 // pred_region
          %249 = dma.done [#allocation8], 1024
        $region44: #{tpu_custom_call.1} parent=35 // pred_fallthru
          _
        // Predicated region
        $region45: #{tpu_custom_call.1} parent=35 // pred_check
          %p250 = pneg %p118
        $region46: #{tpu_custom_call.1} parent=35 // pred_check_branch
          %252 = sbr.rel (%p250) target = $region48
        $region47: #{tpu_custom_call.1} parent=35 // pred_region
          %253 = dma.done [#allocation8], 2048
        $region48: #{tpu_custom_call.1} parent=35 // pred_fallthru
          _
        %p254 = pneg %p55
        %p255 = pneg %p52
        %p256 = pneg %p76
        %p257 = pneg %p73
        %p258 = pneg %p97
        %p259 = pneg %p94
        %p260 = pneg %p118
        %p261 = pneg %p115
        %p262 = pneg %p146
        %p263 = pneg %p143
        %s264 = sand.u32 %s133, 1
        %s265 = scalar_lea.sflag [#allocation6], %s264
        %s266 = sand.u32 %s133, 1
        %s267 = smul.addr %s266, 8
        %s268 = scalar_lea.vmem [#allocation10], %s267
        %p269 = pneg %p174
        %p270 = pneg %p171
        %s271 = smul.u32 %s27, %s26
        %p272 = scmp.lt.s32.totalorder %s271, 0
        %s273 = scalar_select %p272, %s271, 0
        %s274 = smul.addr %s273, 8
        %s275 = scalar_lea.vmem %s5, %s274
        %s276 = smul.u32 %s27, %s26
        %s277 = smul.u32 %s27, %s26
        %p278 = scmp.lt.s32.totalorder %s277, 0
        %s279 = scalar_select %p278, %s277, 0
        %s280 = smul.addr %s279, 8
        %s281 = scalar_lea.vmem %s5, %s280
        %s282 = smul.u32 %s27, %s26
        %v283 = vld [vmem:[%s2] sm:$0x1]
        %v284 = vld [vmem:[%s2 + $0x1] sm:$0x1]
        %v285 = vld [vmem:[%s2 + $0x2] sm:$0x1]
        %v286 = vld [vmem:[%s2 + $0x3] sm:$0x1]
        %p287 = scmp.eq.s32.totalorder %s26, 0
        // Predicated region
        $region49: #{tpu_custom_call.1} parent=35 // pred_check
          %p288 = pneg %p287
        $region50: #{tpu_custom_call.1} parent=35 // pred_check_branch
          %290 = sbr.rel (%p288) target = $region52
        $region51: #{tpu_custom_call.1} parent=35 // pred_region
          %p291 = scmp.eq.s32.totalorder %s27, 0
          // Predicated region
          $region53: #{tpu_custom_call.1} parent=51 // pred_check
            %p292 = pneg %p291
          $region54: #{tpu_custom_call.1} parent=51 // pred_check_branch
            %294 = sbr.rel (%p292) target = $region56
          $region55: #{tpu_custom_call.1} parent=51 // pred_region
            %295 = vst [vmem:[#allocation2] sm:$0x1] 0.0
            %296 = vst [vmem:[#allocation3] sm:$0x1] 0.0
          $region56: #{tpu_custom_call.1} parent=51 // pred_fallthru
            _
          %v297 = vld [vmem:[#allocation4] sm:$0xff]
          %v298 = vld [vmem:[#allocation7] sm:$0xff]
          %v299 = vld [vmem:[#allocation7 + $0x8] sm:$0xff]
          %v300 = vld [vmem:[#allocation7 + $0x10] sm:$0xff]
          %v301 = vld [vmem:[#allocation7 + $0x18] sm:$0xff]
          %v302 = vld [vmem:[#allocation7 + $0x20] sm:$0xff]
          %v303 = vld [vmem:[#allocation7 + $0x28] sm:$0xff]
          %v304 = vld [vmem:[#allocation7 + $0x30] sm:$0xff]
          %v305 = vld [vmem:[#allocation7 + $0x38] sm:$0xff]
          %v306 = vlaneseq
          %v307 = vshrl.u32 %v306, 7
          %v308 = vsub.s32 0, %v307
          %v309 = vrot.slane %v283, %v308
          %vm310 = vcmask 523264
          %v312 = vsel %vm310, %v297, 0
          %314 = vmatprep.subr.mxu0 0.0
          %315 = vmatpush1.msra.mxu0 %v298
          %316 = vmatprep.subr.mxu0 0.0
          %317 = vmatpush1.msra.mxu0 %v299
          %318 = vmatprep.subr.mxu0 0.0
          %319 = vmatpush1.msra.mxu0 %v300
          %320 = vmatprep.subr.mxu0 0.0
          %321 = vmatpush1.msra.mxu0 %v301
          %322 = vmatprep.subr.mxu0 0.0
          %323 = vmatpush1.msra.mxu0 %v302
          %324 = vmatprep.subr.mxu0 0.0
          %325 = vmatpush1.msra.mxu0 %v303
          %326 = vmatprep.subr.mxu0 0.0
          %327 = vmatpush1.msra.mxu0 %v304
          %328 = vmatprep.subr.mxu0 0.0
          %329 = vmatpush1.msra.mxu0 %v305
          %330 = vmatprep.subr.mxu0 0.0
          %331 = vmatpush1.msra.mxu0 0.0
          %332 = vmatprep.subr.mxu0 0.0
          %333 = vmatpush1.msra.mxu0 0.0
          %334 = vmatprep.subr.mxu0 0.0
          %335 = vmatpush1.msra.mxu0 0.0
          %336 = vmatprep.subr.mxu0 0.0
          %337 = vmatpush1.msra.mxu0 0.0
          %338 = vmatprep.subr.mxu0 0.0
          %339 = vmatpush1.msra.mxu0 0.0
          %340 = vmatprep.subr.mxu0 0.0
          %341 = vmatpush1.msra.mxu0 0.0
          %342 = vmatprep.subr.mxu0 0.0
          %343 = vmatpush1.msra.mxu0 0.0
          %344 = vmatprep.subr.mxu0 0.0
          %345 = vmatpush1.msra.mxu0 0.0
          %346 = vmatprep.subr.mxu0 0.0
          %347 = vmatpush1.msra.mxu0 0.0
          %348 = vmatprep.subr.mxu0 0.0
          %349 = vmatpush1.msra.mxu0 0.0
          %350 = vmatprep.subr.mxu0 0.0
          %351 = vmatpush1.msra.mxu0 0.0
          %352 = vmatprep.subr.mxu0 0.0
          %353 = vmatpush1.msra.mxu0 0.0
          %354 = vmatprep.subr.mxu0 0.0
          %355 = vmatpush1.msra.mxu0 0.0
          %356 = vmatprep.subr.mxu0 0.0
          %357 = vmatpush1.msra.mxu0 0.0
          %358 = vmatprep.subr.mxu0 0.0
          %359 = vmatpush1.msra.mxu0 0.0
          %360 = vmatprep.subr.mxu0 0.0
          %361 = vmatpush1.msra.mxu0 0.0
          %362 = vmatprep.subr.mxu0 0.0
          %363 = vmatpush1.msra.mxu0 0.0
          %364 = vmatprep.subr.mxu0 0.0
          %365 = vmatpush1.msra.mxu0 0.0
          %366 = vmatprep.subr.mxu0 0.0
          %367 = vmatpush1.msra.mxu0 0.0
          %368 = vmatprep.subr.mxu0 0.0
          %369 = vmatpush1.msra.mxu0 0.0
          %370 = vmatprep.subr.mxu0 0.0
          %371 = vmatpush1.msra.mxu0 0.0
          %372 = vmatprep.subr.mxu0 0.0
          %373 = vmatpush1.msra.mxu0 0.0
          %374 = vmatprep.subr.mxu0 0.0
          %375 = vmatpush1.msra.mxu0 0.0
          %376 = vmatprep.subr.mxu0 0.0
          %377 = vmatpush1.msra.mxu0 0.0
          %378 = vmatprep.mubr.f32.mxu0 0.0
          %379 = vmatmul.mubr.f32.gmra.mrb[0].mxu0 %v312
          %v380 = vpop.f32.mrb[0].mxu0
          %v381 = vadd.f32 %v309, %v380
          %v382 = vpop.f32.mrb[0].mxu0
          %383 = vdwg.mxu0
          %s384 = smul.u32 %s27, 8
          %v385 = vlaneseq
          %v386 = vand.u32 %v385, 127
          %v387 = vstv %s384
          %v388 = vadd.s32 %v387, %v386
          %vm389 = vcmp.lt.s32.totalorder %v388, 8
          %v390 = vsel %vm389, 1, 0
          %v391 = vcvt.s32.f32 %v390
          %v392 = vld [vmem:[#allocation2] sm:$0x1]
          %vm393 = vcmask 64512
          %v395 = vsel %vm393, %v391, 0
          %397 = vmatprep.subr.mxu0 0.0
          %398 = vmatpush1.msra.mxu0 %v381
          %399 = vmatprep.subr.mxu0 0.0
          %400 = vmatpush1.msra.mxu0 0.0
          %401 = vmatprep.subr.mxu0 0.0
          %402 = vmatpush1.msra.mxu0 0.0
          %403 = vmatprep.subr.mxu0 0.0
          %404 = vmatpush1.msra.mxu0 0.0
          %405 = vmatprep.subr.mxu0 0.0
          %406 = vmatpush1.msra.mxu0 0.0
          %407 = vmatprep.subr.mxu0 0.0
          %408 = vmatpush1.msra.mxu0 0.0
          %409 = vmatprep.subr.mxu0 0.0
          %410 = vmatpush1.msra.mxu0 0.0
          %411 = vmatprep.subr.mxu0 0.0
          %412 = vmatpush1.msra.mxu0 0.0
          %413 = vmatprep.subr.mxu0 0.0
          %414 = vmatpush1.msra.mxu0 0.0
          %415 = vmatprep.subr.mxu0 0.0
          %416 = vmatpush1.msra.mxu0 0.0
          %417 = vmatprep.subr.mxu0 0.0
          %418 = vmatpush1.msra.mxu0 0.0
          %419 = vmatprep.subr.mxu0 0.0
          %420 = vmatpush1.msra.mxu0 0.0
          %421 = vmatprep.subr.mxu0 0.0
          %422 = vmatpush1.msra.mxu0 0.0
          %423 = vmatprep.subr.mxu0 0.0
          %424 = vmatpush1.msra.mxu0 0.0
          %425 = vmatprep.subr.mxu0 0.0
          %426 = vmatpush1.msra.mxu0 0.0
          %427 = vmatprep.subr.mxu0 0.0
          %428 = vmatpush1.msra.mxu0 0.0
          %429 = vmatprep.subr.mxu0 0.0
          %430 = vmatpush1.msra.mxu0 0.0
          %431 = vmatprep.subr.mxu0 0.0
          %432 = vmatpush1.msra.mxu0 0.0
          %433 = vmatprep.subr.mxu0 0.0
          %434 = vmatpush1.msra.mxu0 0.0
          %435 = vmatprep.subr.mxu0 0.0
          %436 = vmatpush1.msra.mxu0 0.0
          %437 = vmatprep.subr.mxu0 0.0
          %438 = vmatpush1.msra.mxu0 0.0
          %439 = vmatprep.subr.mxu0 0.0
          %440 = vmatpush1.msra.mxu0 0.0
          %441 = vmatprep.subr.mxu0 0.0
          %442 = vmatpush1.msra.mxu0 0.0
          %443 = vmatprep.subr.mxu0 0.0
          %444 = vmatpush1.msra.mxu0 0.0
          %445 = vmatprep.subr.mxu0 0.0
          %446 = vmatpush1.msra.mxu0 0.0
          %447 = vmatprep.subr.mxu0 0.0
          %448 = vmatpush1.msra.mxu0 0.0
          %449 = vmatprep.subr.mxu0 0.0
          %450 = vmatpush1.msra.mxu0 0.0
          %451 = vmatprep.subr.mxu0 0.0
          %452 = vmatpush1.msra.mxu0 0.0
          %453 = vmatprep.subr.mxu0 0.0
          %454 = vmatpush1.msra.mxu0 0.0
          %455 = vmatprep.subr.mxu0 0.0
          %456 = vmatpush1.msra.mxu0 0.0
          %457 = vmatprep.subr.mxu0 0.0
          %458 = vmatpush1.msra.mxu0 0.0
          %459 = vmatprep.subr.mxu0 0.0
          %460 = vmatpush1.msra.mxu0 0.0
          %461 = vmatprep.mubr.f32.mxu0 0.0
          %462 = vmatmul.mubr.f32.gmra.mrb[0].mxu0 %v395
          %v463 = vpop.f32.mrb[0].mxu0
          %v464 = vadd.f32 0.0, %v463
          %v465 = vpop.f32.mrb[0].mxu0
          %466 = vdwg.mxu0
          %v467 = vadd.f32 %v392, %v464
          %468 = vst [vmem:[#allocation2] sm:$0x1] %v467
          %v469 = vld [vmem:[#allocation3] sm:$0x1]
          %v470 = vmul.f32 %v381, %v381
          %471 = vmatprep.subr.mxu0 0.0
          %472 = vmatpush1.msra.mxu0 %v470
          %473 = vmatprep.subr.mxu0 0.0
          %474 = vmatpush1.msra.mxu0 0.0
          %475 = vmatprep.subr.mxu0 0.0
          %476 = vmatpush1.msra.mxu0 0.0
          %477 = vmatprep.subr.mxu0 0.0
          %478 = vmatpush1.msra.mxu0 0.0
          %479 = vmatprep.subr.mxu0 0.0
          %480 = vmatpush1.msra.mxu0 0.0
          %481 = vmatprep.subr.mxu0 0.0
          %482 = vmatpush1.msra.mxu0 0.0
          %483 = vmatprep.subr.mxu0 0.0
          %484 = vmatpush1.msra.mxu0 0.0
          %485 = vmatprep.subr.mxu0 0.0
          %486 = vmatpush1.msra.mxu0 0.0
          %487 = vmatprep.subr.mxu0 0.0
          %488 = vmatpush1.msra.mxu0 0.0
          %489 = vmatprep.subr.mxu0 0.0
          %490 = vmatpush1.msra.mxu0 0.0
          %491 = vmatprep.subr.mxu0 0.0
          %492 = vmatpush1.msra.mxu0 0.0
          %493 = vmatprep.subr.mxu0 0.0
          %494 = vmatpush1.msra.mxu0 0.0
          %495 = vmatprep.subr.mxu0 0.0
          %496 = vmatpush1.msra.mxu0 0.0
          %497 = vmatprep.subr.mxu0 0.0
          %498 = vmatpush1.msra.mxu0 0.0
          %499 = vmatprep.subr.mxu0 0.0
          %500 = vmatpush1.msra.mxu0 0.0
          %501 = vmatprep.subr.mxu0 0.0
          %502 = vmatpush1.msra.mxu0 0.0
          %503 = vmatprep.subr.mxu0 0.0
          %504 = vmatpush1.msra.mxu0 0.0
          %505 = vmatprep.subr.mxu0 0.0
          %506 = vmatpush1.msra.mxu0 0.0
          %507 = vmatprep.subr.mxu0 0.0
          %508 = vmatpush1.msra.mxu0 0.0
          %509 = vmatprep.subr.mxu0 0.0
          %510 = vmatpush1.msra.mxu0 0.0
          %511 = vmatprep.subr.mxu0 0.0
          %512 = vmatpush1.msra.mxu0 0.0
          %513 = vmatprep.subr.mxu0 0.0
          %514 = vmatpush1.msra.mxu0 0.0
          %515 = vmatprep.subr.mxu0 0.0
          %516 = vmatpush1.msra.mxu0 0.0
          %517 = vmatprep.subr.mxu0 0.0
          %518 = vmatpush1.msra.mxu0 0.0
          %519 = vmatprep.subr.mxu0 0.0
          %520 = vmatpush1.msra.mxu0 0.0
          %521 = vmatprep.subr.mxu0 0.0
          %522 = vmatpush1.msra.mxu0 0.0
          %523 = vmatprep.subr.mxu0 0.0
          %524 = vmatpush1.msra.mxu0 0.0
          %525 = vmatprep.subr.mxu0 0.0
          %526 = vmatpush1.msra.mxu0 0.0
          %527 = vmatprep.subr.mxu0 0.0
          %528 = vmatpush1.msra.mxu0 0.0
          %529 = vmatprep.subr.mxu0 0.0
          %530 = vmatpush1.msra.mxu0 0.0
          %531 = vmatprep.subr.mxu0 0.0
          %532 = vmatpush1.msra.mxu0 0.0
          %533 = vmatprep.subr.mxu0 0.0
          %534 = vmatpush1.msra.mxu0 0.0
          %535 = vmatprep.mubr.f32.mxu0 0.0
          %536 = vmatmul.mubr.f32.gmra.mrb[0].mxu0 %v395
          %v537 = vpop.f32.mrb[0].mxu0
          %v538 = vadd.f32 0.0, %v537
          %v539 = vpop.f32.mrb[0].mxu0
          %540 = vdwg.mxu0
          %v541 = vadd.f32 %v469, %v538
          %542 = vst [vmem:[#allocation3] sm:$0x1] %v541
        $region52: #{tpu_custom_call.1} parent=35 // pred_fallthru
          _
        %p543 = scmp.eq.s32.totalorder %s26, 1
        // Predicated region
        $region57: #{tpu_custom_call.1} parent=35 // pred_check
          %p544 = pneg %p543
        $region58: #{tpu_custom_call.1} parent=35 // pred_check_branch
          %546 = sbr.rel (%p544) target = $region60
        $region59: #{tpu_custom_call.1} parent=35 // pred_region
          %v547 = vld [vmem:[#allocation4] sm:$0xff]
          %v548 = vld [vmem:[#allocation7] sm:$0xff]
          %v549 = vld [vmem:[#allocation7 + $0x8] sm:$0xff]
          %v550 = vld [vmem:[#allocation7 + $0x10] sm:$0xff]
          %v551 = vld [vmem:[#allocation7 + $0x18] sm:$0xff]
          %v552 = vld [vmem:[#allocation7 + $0x20] sm:$0xff]
          %v553 = vld [vmem:[#allocation7 + $0x28] sm:$0xff]
          %v554 = vld [vmem:[#allocation7 + $0x30] sm:$0xff]
          %v555 = vld [vmem:[#allocation7 + $0x38] sm:$0xff]
          %v556 = vlaneseq
          %v557 = vshrl.u32 %v556, 7
          %v558 = vsub.s32 0, %v557
          %v559 = vrot.slane %v283, %v558
          %vm560 = vcmask 523264
          %v562 = vsel %vm560, %v547, 0
          %564 = vmatprep.subr.mxu0 0.0
          %565 = vmatpush1.msra.mxu0 %v548
          %566 = vmatprep.subr.mxu0 0.0
          %567 = vmatpush1.msra.mxu0 %v549
          %568 = vmatprep.subr.mxu0 0.0
          %569 = vmatpush1.msra.mxu0 %v550
          %570 = vmatprep.subr.mxu0 0.0
          %571 = vmatpush1.msra.mxu0 %v551
          %572 = vmatprep.subr.mxu0 0.0
          %573 = vmatpush1.msra.mxu0 %v552
          %574 = vmatprep.subr.mxu0 0.0
          %575 = vmatpush1.msra.mxu0 %v553
          %576 = vmatprep.subr.mxu0 0.0
          %577 = vmatpush1.msra.mxu0 %v554
          %578 = vmatprep.subr.mxu0 0.0
          %579 = vmatpush1.msra.mxu0 %v555
          %580 = vmatprep.subr.mxu0 0.0
          %581 = vmatpush1.msra.mxu0 0.0
          %582 = vmatprep.subr.mxu0 0.0
          %583 = vmatpush1.msra.mxu0 0.0
          %584 = vmatprep.subr.mxu0 0.0
          %585 = vmatpush1.msra.mxu0 0.0
          %586 = vmatprep.subr.mxu0 0.0
          %587 = vmatpush1.msra.mxu0 0.0
          %588 = vmatprep.subr.mxu0 0.0
          %589 = vmatpush1.msra.mxu0 0.0
          %590 = vmatprep.subr.mxu0 0.0
          %591 = vmatpush1.msra.mxu0 0.0
          %592 = vmatprep.subr.mxu0 0.0
          %593 = vmatpush1.msra.mxu0 0.0
          %594 = vmatprep.subr.mxu0 0.0
          %595 = vmatpush1.msra.mxu0 0.0
          %596 = vmatprep.subr.mxu0 0.0
          %597 = vmatpush1.msra.mxu0 0.0
          %598 = vmatprep.subr.mxu0 0.0
          %599 = vmatpush1.msra.mxu0 0.0
          %600 = vmatprep.subr.mxu0 0.0
          %601 = vmatpush1.msra.mxu0 0.0
          %602 = vmatprep.subr.mxu0 0.0
          %603 = vmatpush1.msra.mxu0 0.0
          %604 = vmatprep.subr.mxu0 0.0
          %605 = vmatpush1.msra.mxu0 0.0
          %606 = vmatprep.subr.mxu0 0.0
          %607 = vmatpush1.msra.mxu0 0.0
          %608 = vmatprep.subr.mxu0 0.0
          %609 = vmatpush1.msra.mxu0 0.0
          %610 = vmatprep.subr.mxu0 0.0
          %611 = vmatpush1.msra.mxu0 0.0
          %612 = vmatprep.subr.mxu0 0.0
          %613 = vmatpush1.msra.mxu0 0.0
          %614 = vmatprep.subr.mxu0 0.0
          %615 = vmatpush1.msra.mxu0 0.0
          %616 = vmatprep.subr.mxu0 0.0
          %617 = vmatpush1.msra.mxu0 0.0
          %618 = vmatprep.subr.mxu0 0.0
          %619 = vmatpush1.msra.mxu0 0.0
          %620 = vmatprep.subr.mxu0 0.0
          %621 = vmatpush1.msra.mxu0 0.0
          %622 = vmatprep.subr.mxu0 0.0
          %623 = vmatpush1.msra.mxu0 0.0
          %624 = vmatprep.subr.mxu0 0.0
          %625 = vmatpush1.msra.mxu0 0.0
          %626 = vmatprep.subr.mxu0 0.0
          %627 = vmatpush1.msra.mxu0 0.0
          %628 = vmatprep.mubr.f32.mxu0 0.0
          %629 = vmatmul.mubr.f32.gmra.mrb[0].mxu0 %v562
          %v630 = vpop.f32.mrb[0].mxu0
          %v631 = vadd.f32 %v559, %v630
          %v632 = vpop.f32.mrb[0].mxu0
          %633 = vdwg.mxu0
          %v634 = vld [vmem:[#allocation2] sm:$0x1]
          %v635 = vmul.f32 %v634, 0.125
          %v636 = vld [vmem:[#allocation3] sm:$0x1]
          %v637 = vmul.f32 %v636, 0.125
          %v638 = vmul.f32 %v635, %v635
          %v639 = vsub.f32 %v637, %v638
          %v640 = vmax.f32 %v639, 0.0
          %v642 = vlaneseq
          %v643 = vshrl.u32 %v642, 7
          %v644 = vsub.s32 0, %v643
          %v645 = vrot.slane %v635, %v644
          %v647 = vsub.f32 %v631, %v645
          %v648 = vadd.f32 %v640, 1e-05
          %v649 = vrsqrt.pop %v648
          %v651 = vlaneseq
          %v652 = vshrl.u32 %v651, 7
          %v653 = vsub.s32 0, %v652
          %v654 = vrot.slane %v649, %v653
          %v656 = vmul.f32 %v647, %v654
          %v657 = vlaneseq
          %v658 = vshrl.u32 %v657, 7
          %v659 = vsub.s32 0, %v658
          %v660 = vrot.slane %v284, %v659
          %v661 = vmul.f32 %v656, %v660
          %v662 = vlaneseq
          %v663 = vshrl.u32 %v662, 7
          %v664 = vsub.s32 0, %v663
          %v665 = vrot.slane %v285, %v664
          %v666 = vadd.f32 %v661, %v665
          %v667 = vmax.f32 %v666, 0.0
          %v668 = vld [vmem:[#allocation9] sm:$0xff]
          %v669 = vld [vmem:[#allocation9 + $0x8] sm:$0xff]
          %v670 = vld [vmem:[#allocation9 + $0x10] sm:$0xff]
          %v671 = vld [vmem:[#allocation9 + $0x18] sm:$0xff]
          %v672 = vld [vmem:[#allocation9 + $0x20] sm:$0xff]
          %v673 = vld [vmem:[#allocation9 + $0x28] sm:$0xff]
          %v674 = vld [vmem:[#allocation9 + $0x30] sm:$0xff]
          %v675 = vld [vmem:[#allocation9 + $0x38] sm:$0xff]
          %v676 = vld [vmem:[#allocation9 + $0x40] sm:$0xff]
          %v677 = vld [vmem:[#allocation9 + $0x48] sm:$0xff]
          %v678 = vld [vmem:[#allocation9 + $0x50] sm:$0xff]
          %v679 = vld [vmem:[#allocation9 + $0x58] sm:$0xff]
          %v680 = vld [vmem:[#allocation9 + $0x60] sm:$0xff]
          %v681 = vld [vmem:[#allocation9 + $0x68] sm:$0xff]
          %v682 = vld [vmem:[#allocation9 + $0x70] sm:$0xff]
          %v683 = vld [vmem:[#allocation9 + $0x78] sm:$0xff]
          %v684 = vlaneseq
          %v685 = vshrl.u32 %v684, 7
          %v686 = vsub.s32 0, %v685
          %v687 = vrot.slane %v286, %v686
          %688 = vmatprep.subr.mxu0 0.0
          %689 = vmatpush1.msra.mxu0 %v668
          %690 = vmatprep.subr.mxu0 0.0
          %691 = vmatpush1.msra.mxu0 %v669
          %692 = vmatprep.subr.mxu0 0.0
          %693 = vmatpush1.msra.mxu0 %v670
          %694 = vmatprep.subr.mxu0 0.0
          %695 = vmatpush1.msra.mxu0 %v671
          %696 = vmatprep.subr.mxu0 0.0
          %697 = vmatpush1.msra.mxu0 %v672
          %698 = vmatprep.subr.mxu0 0.0
          %699 = vmatpush1.msra.mxu0 %v673
          %700 = vmatprep.subr.mxu0 0.0
          %701 = vmatpush1.msra.mxu0 %v674
          %702 = vmatprep.subr.mxu0 0.0
          %703 = vmatpush1.msra.mxu0 %v675
          %704 = vmatprep.subr.mxu0 0.0
          %705 = vmatpush1.msra.mxu0 %v676
          %706 = vmatprep.subr.mxu0 0.0
          %707 = vmatpush1.msra.mxu0 %v677
          %708 = vmatprep.subr.mxu0 0.0
          %709 = vmatpush1.msra.mxu0 %v678
          %710 = vmatprep.subr.mxu0 0.0
          %711 = vmatpush1.msra.mxu0 %v679
          %712 = vmatprep.subr.mxu0 0.0
          %713 = vmatpush1.msra.mxu0 %v680
          %714 = vmatprep.subr.mxu0 0.0
          %715 = vmatpush1.msra.mxu0 %v681
          %716 = vmatprep.subr.mxu0 0.0
          %717 = vmatpush1.msra.mxu0 %v682
          %718 = vmatprep.subr.mxu0 0.0
          %719 = vmatpush1.msra.mxu0 %v683
          %720 = vmatprep.subr.mxu0 0.0
          %721 = vmatpush1.msra.mxu0 0.0
          %722 = vmatprep.subr.mxu0 0.0
          %723 = vmatpush1.msra.mxu0 0.0
          %724 = vmatprep.subr.mxu0 0.0
          %725 = vmatpush1.msra.mxu0 0.0
          %726 = vmatprep.subr.mxu0 0.0
          %727 = vmatpush1.msra.mxu0 0.0
          %728 = vmatprep.subr.mxu0 0.0
          %729 = vmatpush1.msra.mxu0 0.0
          %730 = vmatprep.subr.mxu0 0.0
          %731 = vmatpush1.msra.mxu0 0.0
          %732 = vmatprep.subr.mxu0 0.0
          %733 = vmatpush1.msra.mxu0 0.0
          %734 = vmatprep.subr.mxu0 0.0
          %735 = vmatpush1.msra.mxu0 0.0
          %736 = vmatprep.subr.mxu0 0.0
          %737 = vmatpush1.msra.mxu0 0.0
          %738 = vmatprep.subr.mxu0 0.0
          %739 = vmatpush1.msra.mxu0 0.0
          %740 = vmatprep.subr.mxu0 0.0
          %741 = vmatpush1.msra.mxu0 0.0
          %742 = vmatprep.subr.mxu0 0.0
          %743 = vmatpush1.msra.mxu0 0.0
          %744 = vmatprep.subr.mxu0 0.0
          %745 = vmatpush1.msra.mxu0 0.0
          %746 = vmatprep.subr.mxu0 0.0
          %747 = vmatpush1.msra.mxu0 0.0
          %748 = vmatprep.subr.mxu0 0.0
          %749 = vmatpush1.msra.mxu0 0.0
          %750 = vmatprep.subr.mxu0 0.0
          %751 = vmatpush1.msra.mxu0 0.0
          %752 = vmatprep.mubr.f32.mxu0 0.0
          %753 = vmatmul.mubr.f32.gmra.mrb[0].mxu0 %v667
          %v754 = vpop.f32.mrb[0].mxu0
          %v755 = vadd.f32 %v687, %v754
          %v756 = vpop.f32.mrb[0].mxu0
          %757 = vdwg.mxu0
          %758 = vmax.xlane.f32.xlu0 %v755
          %v759 = vpop.xlane.xlu0 %758
          %v760 = vsub.f32 %v755, %v759
          %v761 = vmul.f32 %v760, 1.442695
          %v762 = vpow.pop %v761
          %763 = vadd.xlane.f32.xlu0 %v762
          %v764 = vpop.xlane.xlu0 %763
          %v765 = vrcp.pop %v764
          %v766 = vmul.f32 %v762, %v765
          %767 = vst [vmem:[%s268] sm:$0xff] %v766
          %v768 = vlaneseq
          %v769 = vand.u32 %v768, 127
          %vm770 = vcmp.eq.f32.partialorder %v755, %v759
          %v771 = vsel %vm770, %v769, 128
          %v772 = vand.u32 %v771, 65535
          %v773 = vshra.s32 %v771, 16
          %v774 = vcvt.s32.f32 %v772
          %v775 = vcvt.s32.f32 %v773
          %776 = vmin.xlane.f32.xlu0 %v775
          %v777 = vpop.xlane.xlu0 %776
          %vm778 = vcmp.eq.f32.partialorder %v775, %v777
          %v779 = vsel %vm778, %v774, inf
          %780 = vmin.xlane.f32.xlu0 %v779
          %v781 = vpop.xlane.xlu0 %780
          %v782 = vcvt.f32.s32 %v781
          %v783 = vcvt.f32.s32 %v777
          %v784 = vshll.u32 %v783, 16
          %v785 = vadd.s32 %v784, %v782
          %vm786 = vcmask 7168
          %787 = vst.msk [vmem:[%s281] sm:$0xff] %vm786, %v785
        $region60: #{tpu_custom_call.1} parent=35 // pred_fallthru
          _
        %s788 = sand.u32 %s133, 1
        %s789 = scalar_lea.sflag [#allocation6], %s788
        %s790 = sand.u32 %s133, 1
        %s791 = smul.addr %s790, 8
        %s792 = scalar_lea.vmem [#allocation10], %s791
        %s793 = smul.u32 %s27, %s26
        %p794 = scmp.lt.s32.totalorder %s793, 0
        %s795 = scalar_select %p794, %s793, 0
        %s796 = smul.addr %s795, 8
        %s797 = scalar_lea.vmem %s5, %s796
        // Predicated region
        $region61: #{tpu_custom_call.1} parent=35 // pred_check
          %p798 = pneg %p143
        $region62: #{tpu_custom_call.1} parent=35 // pred_check_branch
          %800 = sbr.rel (%p798) target = $region64
        $region63: #{tpu_custom_call.1} parent=35 // pred_region
          %s801 = smul.u32 %s27, %s26
          %s803 = ssub.s32 128, 128
          %804 = vsyncadd %s789, %s803
          %s805 = smul.addr %s801, 128
          %s806 = scalar_lea.hbm %s4, %s805
          %s808 = sshll.u32 %s792, 4
          %s809 = int_to_ptr.vmem [resolvable:$true] %s808
          %811 = dma.vmem_to_hbm [thread:$0]  %s809, 128, %s806, %s789
        $region64: #{tpu_custom_call.1} parent=35 // pred_fallthru
          _
        // Predicated region
        $region65: #{tpu_custom_call.1} parent=35 // pred_check
          %p812 = pneg %p171
        $region66: #{tpu_custom_call.1} parent=35 // pred_check_branch
          %814 = sbr.rel (%p812) target = $region68
        $region67: #{tpu_custom_call.1} parent=35 // pred_region
          %s815 = smul.u32 %s27, %s26
        $region68: #{tpu_custom_call.1} parent=35 // pred_fallthru
          _
      $region36: #{tpu_custom_call.1} parent=5 // pred_fallthru
        _
      %p816 = scmp.le.s32.totalorder 2, %s17
      // Predicated region
      $region69: #{tpu_custom_call.1} parent=5 // pred_check
        %p817 = pneg %p816
      $region70: #{tpu_custom_call.1} parent=5 // pred_check_branch
        %819 = sbr.rel (%p817) target = $region72
      $region71: #{tpu_custom_call.1} parent=5 // pred_region
        %s820 = ssub.s32 %s17, 2
        // Predicated region
        $region73: #{tpu_custom_call.1} parent=71 // pred_check
          %p821 = pneg %p149
        $region74: #{tpu_custom_call.1} parent=71 // pred_check_branch
          %823 = sbr.rel (%p821) target = $region76
        $region75: #{tpu_custom_call.1} parent=71 // pred_region
          %s824 = sand.u32 %s134, 1
          %s825 = scalar_lea.sflag [#allocation6], %s824
          %s826 = sand.u32 %s134, 1
          %s827 = smul.addr %s826, 8
          %s828 = scalar_lea.vmem [#allocation10], %s827
          %829 = dma.done %s825, 128
        $region76: #{tpu_custom_call.1} parent=71 // pred_fallthru
          _
        // Predicated region
        $region77: #{tpu_custom_call.1} parent=71 // pred_check
          %p830 = pneg %p177
        $region78: #{tpu_custom_call.1} parent=71 // pred_check_branch
          %832 = sbr.rel (%p830) target = $region80
        $region79: #{tpu_custom_call.1} parent=71 // pred_region
          %s833 = smul.u32 %s29, %s28
          %p834 = scmp.lt.s32.totalorder %s833, 0
          %s835 = scalar_select %p834, %s833, 0
          %s836 = smul.addr %s835, 8
          %s837 = scalar_lea.vmem %s5, %s836
        $region80: #{tpu_custom_call.1} parent=71 // pred_fallthru
          _
      $region72: #{tpu_custom_call.1} parent=5 // pred_fallthru
        _
    $region6: #{tpu_custom_call.1} parent=1 // loop_footer
      %s21 = sadd.s32 1, %s17
    $region7: #{tpu_custom_call.1} parent=1 // loop_footer_branch
      %16 = sbr.rel target = $region3
    $region8: #{tpu_custom_call.1} parent=1 // loop_exit
      _
    %838 = vsyncpa [#allocation5], 1
    %s839 = scalar_lea.sflag [#allocation5], 1
    %840 = vsyncpa %s839, 1
    %841 = vsyncpa [#allocation8], 1
    %842 = vsyncpa [#allocation6], 1
    %s843 = scalar_lea.sflag [#allocation6], 1
    %844 = vsyncpa %s843, 1

</llo_original>
